<compile_context>
chip_gen: v7x
topology: tpu7x:2x2x1
jax: 0.10.0
libtpu: 0.0.40
codegen_flags: <defaults>
</compile_context>

<pallas_src>
import math
import functools

import jax
import jax.numpy as jnp
from jax.experimental import pallas as pl
from jax.experimental.pallas import tpu as pltpu


# ---------------------------------------------------------------------------
# Stage 1: fused Q/K/V projection -> head-major layout (B, H, S, d_k)
# ---------------------------------------------------------------------------
def _qkv_proj_kernel(q_ref, k_ref, v_ref, wq_ref, wk_ref, wv_ref,
                     qo_ref, ko_ref, vo_ref, *, n_head, d_k, scale):
    # Block shapes: activations (1, TS, E); weights (E, E) resident;
    # outputs (1, H, TS, d_k).
    xq = q_ref[0]                      # (TS, E), native dtype
    xk = k_ref[0]
    xv = v_ref[0]

    # Native-dtype MXU matmuls with f32 accumulation; fold 1/sqrt(d_k) into Q.
    Q = jnp.dot(xq, wq_ref[...], preferred_element_type=jnp.float32) * scale
    K = jnp.dot(xk, wk_ref[...], preferred_element_type=jnp.float32)
    V = jnp.dot(xv, wv_ref[...], preferred_element_type=jnp.float32)

    # Split heads by direct slab writes (no transpose, no concat).
    for h in range(n_head):
        lo = h * d_k
        qo_ref[0, h] = Q[:, lo:lo + d_k].astype(qo_ref.dtype)
        ko_ref[0, h] = K[:, lo:lo + d_k].astype(ko_ref.dtype)
        vo_ref[0, h] = V[:, lo:lo + d_k].astype(vo_ref.dtype)


# ---------------------------------------------------------------------------
# Stage 2: flash attention (online softmax) + fused output projection
# ---------------------------------------------------------------------------
def _flash_mha_kernel(q_ref, k_ref, v_ref, mask_ref, wo_ref, o_ref,
                      m_sc, l_sc, acc_sc, *, n_head, d_k):
    # Block shapes: q (1,H,TQ,d_k), k/v (1,H,TK,d_k), mask (1,TQ,TK),
    # wo (E,E) resident, out (1,TQ,E).  Grid: (B, q-tiles, kv-tiles).
    ki = pl.program_id(2)

    @pl.when(ki == 0)
    def _init():
        m_sc[...] = jnp.full(m_sc.shape, -jnp.inf, dtype=m_sc.dtype)
        l_sc[...] = jnp.zeros(l_sc.shape, dtype=l_sc.dtype)
        acc_sc[...] = jnp.zeros(acc_sc.shape, dtype=acc_sc.dtype)

    qh = q_ref[0]                      # (H, TQ, d_k) native dtype, pre-scaled
    kh = k_ref[0]                      # (H, TK, d_k)
    vh = v_ref[0]                      # (H, TK, d_k)
    keep = mask_ref[0] != 0            # (TQ, TK), shared across heads

    # Scores for all heads at once: batched over the leading head dim,
    # contracting d_k of both operands (no explicit transpose).
    s = jnp.einsum('hqd,hkd->hqk', qh, kh,
                   preferred_element_type=jnp.float32)     # (H, TQ, TK) f32
    # Large finite negative (not -inf) so fully-masked rows don't NaN.
    s = jnp.where(keep[None, :, :], s, jnp.float32(-1e30))

    # Online softmax update (f32 stats).
    m_prev = m_sc[...]
    m_new = jnp.maximum(m_prev, s.max(axis=-1, keepdims=True))   # (H, TQ, 1)
    alpha = jnp.exp(m_prev - m_new)
    p = jnp.exp(s - m_new)                                       # (H, TQ, TK)
    l_sc[...] = alpha * l_sc[...] + p.sum(axis=-1, keepdims=True)

    pv = jnp.einsum('hqk,hkd->hqd', p.astype(vh.dtype), vh,
                    preferred_element_type=jnp.float32)          # (H, TQ, d_k)
    acc_sc[...] = alpha * acc_sc[...] + pv
    m_sc[...] = m_new

    # TODO(synk): dropout on attention weights is identity in eval mode; not applied.

    @pl.when(ki == pl.num_programs(2) - 1)
    def _finalize():
        inv_l = pl.reciprocal(l_sc[...], approx=True)            # (H, TQ, 1)
        ctx = (acc_sc[...] * inv_l).astype(wo_ref.dtype)         # (H, TQ, d_k)
        tq = ctx.shape[1]
        e = wo_ref.shape[1]
        # out = concat_h(ctx_h) @ W_o  ==  sum_h ctx_h @ W_o[h*d_k:(h+1)*d_k]
        out = jnp.zeros((tq, e), dtype=jnp.float32)
        for h in range(n_head):
            out = out + jnp.dot(ctx[h], wo_ref[h * d_k:(h + 1) * d_k, :],
                                preferred_element_type=jnp.float32)
        o_ref[0] = out.astype(o_ref.dtype)                       # lane-dense (TQ, E)


# ---------------------------------------------------------------------------
# Wrapper
# ---------------------------------------------------------------------------
def multi_head_attention(q, k, v, mask, wq, wk, wv, wo, *, n_head,
                         block_q=128, block_kv=128, block_s=256):
    """q, k, v: (B, S, E); mask: (B, S, S) (0 = masked); weights (E, E).
    Returns (B, S, E)."""
    B, S, E = q.shape
    assert E % n_head == 0
    d_k = E // n_head
    scale = 1.0 / math.sqrt(d_k)

    block_s = min(block_s, S)
    block_q = min(block_q, S)
    block_kv = min(block_kv, S)
    assert S % block_s == 0 and S % block_q == 0 and S % block_kv == 0

    # ---- stage 1: Q/K/V projections ----
    proj_kernel = functools.partial(_qkv_proj_kernel,
                                    n_head=n_head, d_k=d_k, scale=scale)
    act_spec = pl.BlockSpec((1, block_s, E), lambda b, s: (b, s, 0))
    w_spec = pl.BlockSpec((E, E), lambda b, s: (0, 0))
    head_spec = pl.BlockSpec((1, n_head, block_s, d_k), lambda b, s: (b, 0, s, 0))
    head_shape = jax.ShapeDtypeStruct((B, n_head, S, d_k), q.dtype)

    qh, kh, vh = pl.pallas_call(
        proj_kernel,
        out_shape=(head_shape, head_shape, head_shape),
        grid_spec=pltpu.PrefetchScalarGridSpec(
            num_scalar_prefetch=0,
            grid=(B, S // block_s),
            in_specs=[act_spec, act_spec, act_spec, w_spec, w_spec, w_spec],
            out_specs=(head_spec, head_spec, head_spec),
        ),
        compiler_params=pltpu.CompilerParams(
            dimension_semantics=("parallel", "parallel"),
            vmem_limit_bytes=48 * 1024 * 1024),
    )(q, k, v, wq, wk, wv)

    # ---- stage 2: flash attention + output projection ----
    attn_kernel = functools.partial(_flash_mha_kernel, n_head=n_head, d_k=d_k)
    q_spec = pl.BlockSpec((1, n_head, block_q, d_k), lambda b, qi, ki: (b, 0, qi, 0))
    kv_spec = pl.BlockSpec((1, n_head, block_kv, d_k), lambda b, qi, ki: (b, 0, ki, 0))
    mask_spec = pl.BlockSpec((1, block_q, block_kv), lambda b, qi, ki: (b, qi, ki))
    wo_spec = pl.BlockSpec((E, E), lambda b, qi, ki: (0, 0))
    out_spec = pl.BlockSpec((1, block_q, E), lambda b, qi, ki: (b, qi, 0))

    return pl.pallas_call(
        attn_kernel,
        out_shape=jax.ShapeDtypeStruct((B, S, E), q.dtype),
        grid_spec=pltpu.PrefetchScalarGridSpec(
            num_scalar_prefetch=0,
            grid=(B, S // block_q, S // block_kv),
            in_specs=[q_spec, kv_spec, kv_spec, mask_spec, wo_spec],
            out_specs=out_spec,
            scratch_shapes=[
                pltpu.VMEM((n_head, block_q, 1), jnp.float32),      # m
                pltpu.VMEM((n_head, block_q, 1), jnp.float32),      # l
                pltpu.VMEM((n_head, block_q, d_k), jnp.float32),    # acc
            ]),
        compiler_params=pltpu.CompilerParams(
            dimension_semantics=("parallel", "parallel", "arbitrary"),
            vmem_limit_bytes=48 * 1024 * 1024),
    )(qh, kh, vh, mask, wo)


# ---------------------------------------------------------------------------
# Pure-JAX reference mirroring the PyTorch forward (eval mode)
# ---------------------------------------------------------------------------
def _reference(q, k, v, mask, wq, wk, wv, wo, *, n_head):
    B, S, E = q.shape
    d_k = E // n_head

    def proj(x, w):
        y = x @ w
        return y.reshape(B, S, n_head, d_k).transpose(0, 2, 1, 3)

    Q, K, V = proj(q, wq), proj(k, wk), proj(v, wv)
    scores = jnp.einsum('bnsh,bnth->bnst', Q, K) / math.sqrt(d_k)
    scores = jnp.where(mask[:, None, :, :] == 0, -jnp.inf, scores)
    weights = jax.nn.softmax(scores, axis=-1)
    out = jnp.einsum('bnst,bnth->bnsh', weights, V)
    out = out.transpose(0, 2, 1, 3).reshape(B, S, E)
    return out @ wo


if __name__ == "__main__":
    B, S, E, N_HEAD = 2, 8, 32, 4

    key = jax.random.PRNGKey(0)
    kq, kk, kv, kwq, kwk, kwv, kwo = jax.random.split(key, 7)

    q = jax.random.normal(kq, (B, S, E), dtype=jnp.float32)
    k = jax.random.normal(kk, (B, S, E), dtype=jnp.float32)
    v = jax.random.normal(kv, (B, S, E), dtype=jnp.float32)

    # Causal mask (B, S, S): 1 where attention is allowed, 0 otherwise.
    causal = jnp.tril(jnp.ones((S, S), dtype=jnp.int32))
    mask = jnp.broadcast_to(causal, (B, S, S))

    # Deterministic weight init: (in_features, out_features), x @ W convention.
    wq = jax.random.normal(kwq, (E, E), dtype=jnp.float32) * 0.05
    wk = jax.random.normal(kwk, (E, E), dtype=jnp.float32) * 0.05
    wv = jax.random.normal(kwv, (E, E), dtype=jnp.float32) * 0.05
    wo = jax.random.normal(kwo, (E, E), dtype=jnp.float32) * 0.05

    out = multi_head_attention(q, k, v, mask, wq, wk, wv, wo, n_head=N_HEAD)
    out = jax.block_until_ready(out)

    ref = _reference(q, k, v, mask, wq, wk, wv, wo, n_head=N_HEAD)
    assert out.shape == (B, S, E)
    # Tolerance allows for approx reciprocal in the softmax normalization.
    assert jnp.allclose(out, ref, atol=2e-3, rtol=2e-3), "mismatch vs reference"

    print("KERNEL_OK")
</pallas_src>

<mosaic_0001>
module attributes {stable_mosaic.version = 11 : i64} {
  func.func @_qkv_proj_kernel(%arg0: i32, %arg1: i32, %arg2: memref<1x8x32xf32, #tpu.memory_space<vmem>>, %arg3: memref<1x8x32xf32, #tpu.memory_space<vmem>>, %arg4: memref<1x8x32xf32, #tpu.memory_space<vmem>>, %arg5: memref<32x32xf32, #tpu.memory_space<vmem>>, %arg6: memref<32x32xf32, #tpu.memory_space<vmem>>, %arg7: memref<32x32xf32, #tpu.memory_space<vmem>>, %arg8: memref<1x4x8x8xf32, #tpu.memory_space<vmem>>, %arg9: memref<1x4x8x8xf32, #tpu.memory_space<vmem>>, %arg10: memref<1x4x8x8xf32, #tpu.memory_space<vmem>>) attributes {dimension_semantics = [#tpu.dimension_semantics<parallel>, #tpu.dimension_semantics<parallel>], iteration_bounds = array<i64: 2, 1>, scalar_prefetch = 0 : i64, scratch_operands = 0 : i64, tpu.core_type = #tpu.core_type<tc>, window_params = [{transform_indices = @transform_0, window_bounds = array<i64: 1, 8, 32>}, {transform_indices = @transform_1, window_bounds = array<i64: 1, 8, 32>}, {transform_indices = @transform_2, window_bounds = array<i64: 1, 8, 32>}, {pipeline_mode = #tpu.pipeline_mode<synchronous>, transform_indices = @transform_3, window_bounds = array<i64: 32, 32>}, {pipeline_mode = #tpu.pipeline_mode<synchronous>, transform_indices = @transform_4, window_bounds = array<i64: 32, 32>}, {pipeline_mode = #tpu.pipeline_mode<synchronous>, transform_indices = @transform_5, window_bounds = array<i64: 32, 32>}, {transform_indices = @transform_6, window_bounds = array<i64: 1, 4, 8, 8>}, {transform_indices = @transform_7, window_bounds = array<i64: 1, 4, 8, 8>}, {transform_indices = @transform_8, window_bounds = array<i64: 1, 4, 8, 8>}]} {
    %c0 = arith.constant 0 : index
    %c0_0 = arith.constant 0 : index
    %c0_1 = arith.constant 0 : index
    %0 = vector.load %arg2[%c0, %c0_0, %c0_1] : memref<1x8x32xf32, #tpu.memory_space<vmem>>, vector<1x8x32xf32>
    %1 = vector.shape_cast %0 : vector<1x8x32xf32> to vector<8x32xf32>
    %c0_2 = arith.constant 0 : index
    %c0_3 = arith.constant 0 : index
    %c0_4 = arith.constant 0 : index
    %2 = vector.load %arg3[%c0_2, %c0_3, %c0_4] : memref<1x8x32xf32, #tpu.memory_space<vmem>>, vector<1x8x32xf32>
    %3 = vector.shape_cast %2 : vector<1x8x32xf32> to vector<8x32xf32>
    %c0_5 = arith.constant 0 : index
    %c0_6 = arith.constant 0 : index
    %c0_7 = arith.constant 0 : index
    %4 = vector.load %arg4[%c0_5, %c0_6, %c0_7] : memref<1x8x32xf32, #tpu.memory_space<vmem>>, vector<1x8x32xf32>
    %5 = vector.shape_cast %4 : vector<1x8x32xf32> to vector<8x32xf32>
    %c0_8 = arith.constant 0 : index
    %c0_9 = arith.constant 0 : index
    %6 = vector.load %arg5[%c0_8, %c0_9] : memref<32x32xf32, #tpu.memory_space<vmem>>, vector<32x32xf32>
    %cst = arith.constant dense<0.000000e+00> : vector<8x32xf32>
    %7 = tpu.matmul %1, %6, %cst {dimension_numbers = #tpu.dot_dimension_numbers<[1], [0], [0], [1], [0, 0, 1, 1], [], []>} : vector<8x32xf32>, vector<32x32xf32>, vector<8x32xf32> -> vector<8x32xf32>
    %cst_10 = arith.constant 0.353553385 : f32
    %8 = vector.broadcast %cst_10 : f32 to vector<8x32xf32>
    %9 = arith.mulf %7, %8 : vector<8x32xf32>
    %c0_11 = arith.constant 0 : index
    %c0_12 = arith.constant 0 : index
    %10 = vector.load %arg6[%c0_11, %c0_12] : memref<32x32xf32, #tpu.memory_space<vmem>>, vector<32x32xf32>
    %cst_13 = arith.constant dense<0.000000e+00> : vector<8x32xf32>
    %11 = tpu.matmul %3, %10, %cst_13 {dimension_numbers = #tpu.dot_dimension_numbers<[1], [0], [0], [1], [0, 0, 1, 1], [], []>} : vector<8x32xf32>, vector<32x32xf32>, vector<8x32xf32> -> vector<8x32xf32>
    %c0_14 = arith.constant 0 : index
    %c0_15 = arith.constant 0 : index
    %12 = vector.load %arg7[%c0_14, %c0_15] : memref<32x32xf32, #tpu.memory_space<vmem>>, vector<32x32xf32>
    %cst_16 = arith.constant dense<0.000000e+00> : vector<8x32xf32>
    %13 = tpu.matmul %5, %12, %cst_16 {dimension_numbers = #tpu.dot_dimension_numbers<[1], [0], [0], [1], [0, 0, 1, 1], [], []>} : vector<8x32xf32>, vector<32x32xf32>, vector<8x32xf32> -> vector<8x32xf32>
    %14 = vector.extract_strided_slice %9 {offsets = [0, 0], sizes = [8, 8], strides = [1, 1]} : vector<8x32xf32> to vector<8x8xf32>
    %c0_17 = arith.constant 0 : index
    %c0_18 = arith.constant 0 : index
    %c0_19 = arith.constant 0 : index
    %c0_20 = arith.constant 0 : index
    %15 = vector.load %arg8[%c0_17, %c0_18, %c0_19, %c0_20] : memref<1x4x8x8xf32, #tpu.memory_space<vmem>>, vector<1x1x8x8xf32>
    %16 = vector.shape_cast %15 : vector<1x1x8x8xf32> to vector<8x8xf32>
    %17 = vector.shape_cast %14 : vector<8x8xf32> to vector<1x1x8x8xf32>
    tpu.vector_store %arg8[%c0_17, %c0_18, %c0_19, %c0_20], %17 {strides = array<i32>} : memref<1x4x8x8xf32, #tpu.memory_space<vmem>>, vector<1x1x8x8xf32>,
    %18 = vector.extract_strided_slice %11 {offsets = [0, 0], sizes = [8, 8], strides = [1, 1]} : vector<8x32xf32> to vector<8x8xf32>
    %c0_21 = arith.constant 0 : index
    %c0_22 = arith.constant 0 : index
    %c0_23 = arith.constant 0 : index
    %c0_24 = arith.constant 0 : index
    %19 = vector.load %arg9[%c0_21, %c0_22, %c0_23, %c0_24] : memref<1x4x8x8xf32, #tpu.memory_space<vmem>>, vector<1x1x8x8xf32>
    %20 = vector.shape_cast %19 : vector<1x1x8x8xf32> to vector<8x8xf32>
    %21 = vector.shape_cast %18 : vector<8x8xf32> to vector<1x1x8x8xf32>
    tpu.vector_store %arg9[%c0_21, %c0_22, %c0_23, %c0_24], %21 {strides = array<i32>} : memref<1x4x8x8xf32, #tpu.memory_space<vmem>>, vector<1x1x8x8xf32>,
    %22 = vector.extract_strided_slice %13 {offsets = [0, 0], sizes = [8, 8], strides = [1, 1]} : vector<8x32xf32> to vector<8x8xf32>
    %c0_25 = arith.constant 0 : index
    %c0_26 = arith.constant 0 : index
    %c0_27 = arith.constant 0 : index
    %c0_28 = arith.constant 0 : index
    %23 = vector.load %arg10[%c0_25, %c0_26, %c0_27, %c0_28] : memref<1x4x8x8xf32, #tpu.memory_space<vmem>>, vector<1x1x8x8xf32>
    %24 = vector.shape_cast %23 : vector<1x1x8x8xf32> to vector<8x8xf32>
    %25 = vector.shape_cast %22 : vector<8x8xf32> to vector<1x1x8x8xf32>
    tpu.vector_store %arg10[%c0_25, %c0_26, %c0_27, %c0_28], %25 {strides = array<i32>} : memref<1x4x8x8xf32, #tpu.memory_space<vmem>>, vector<1x1x8x8xf32>,
    %26 = vector.extract_strided_slice %9 {offsets = [0, 8], sizes = [8, 8], strides = [1, 1]} : vector<8x32xf32> to vector<8x8xf32>
    %c0_29 = arith.constant 0 : index
    %c1 = arith.constant 1 : index
    %c0_30 = arith.constant 0 : index
    %c0_31 = arith.constant 0 : index
    %27 = vector.load %arg8[%c0_29, %c1, %c0_30, %c0_31] : memref<1x4x8x8xf32, #tpu.memory_space<vmem>>, vector<1x1x8x8xf32>
    %28 = vector.shape_cast %27 : vector<1x1x8x8xf32> to vector<8x8xf32>
    %29 = vector.shape_cast %26 : vector<8x8xf32> to vector<1x1x8x8xf32>
    tpu.vector_store %arg8[%c0_29, %c1, %c0_30, %c0_31], %29 {strides = array<i32>} : memref<1x4x8x8xf32, #tpu.memory_space<vmem>>, vector<1x1x8x8xf32>,
    %30 = vector.extract_strided_slice %11 {offsets = [0, 8], sizes = [8, 8], strides = [1, 1]} : vector<8x32xf32> to vector<8x8xf32>
    %c0_32 = arith.constant 0 : index
    %c1_33 = arith.constant 1 : index
    %c0_34 = arith.constant 0 : index
    %c0_35 = arith.constant 0 : index
    %31 = vector.load %arg9[%c0_32, %c1_33, %c0_34, %c0_35] : memref<1x4x8x8xf32, #tpu.memory_space<vmem>>, vector<1x1x8x8xf32>
    %32 = vector.shape_cast %31 : vector<1x1x8x8xf32> to vector<8x8xf32>
    %33 = vector.shape_cast %30 : vector<8x8xf32> to vector<1x1x8x8xf32>
    tpu.vector_store %arg9[%c0_32, %c1_33, %c0_34, %c0_35], %33 {strides = array<i32>} : memref<1x4x8x8xf32, #tpu.memory_space<vmem>>, vector<1x1x8x8xf32>,
    %34 = vector.extract_strided_slice %13 {offsets = [0, 8], sizes = [8, 8], strides = [1, 1]} : vector<8x32xf32> to vector<8x8xf32>
    %c0_36 = arith.constant 0 : index
    %c1_37 = arith.constant 1 : index
    %c0_38 = arith.constant 0 : index
    %c0_39 = arith.constant 0 : index
    %35 = vector.load %arg10[%c0_36, %c1_37, %c0_38, %c0_39] : memref<1x4x8x8xf32, #tpu.memory_space<vmem>>, vector<1x1x8x8xf32>
    %36 = vector.shape_cast %35 : vector<1x1x8x8xf32> to vector<8x8xf32>
    %37 = vector.shape_cast %34 : vector<8x8xf32> to vector<1x1x8x8xf32>
    tpu.vector_store %arg10[%c0_36, %c1_37, %c0_38, %c0_39], %37 {strides = array<i32>} : memref<1x4x8x8xf32, #tpu.memory_space<vmem>>, vector<1x1x8x8xf32>,
    %38 = vector.extract_strided_slice %9 {offsets = [0, 16], sizes = [8, 8], strides = [1, 1]} : vector<8x32xf32> to vector<8x8xf32>
    %c0_40 = arith.constant 0 : index
    %c2 = arith.constant 2 : index
    %c0_41 = arith.constant 0 : index
    %c0_42 = arith.constant 0 : index
    %39 = vector.load %arg8[%c0_40, %c2, %c0_41, %c0_42] : memref<1x4x8x8xf32, #tpu.memory_space<vmem>>, vector<1x1x8x8xf32>
    %40 = vector.shape_cast %39 : vector<1x1x8x8xf32> to vector<8x8xf32>
    %41 = vector.shape_cast %38 : vector<8x8xf32> to vector<1x1x8x8xf32>
    tpu.vector_store %arg8[%c0_40, %c2, %c0_41, %c0_42], %41 {strides = array<i32>} : memref<1x4x8x8xf32, #tpu.memory_space<vmem>>, vector<1x1x8x8xf32>,
    %42 = vector.extract_strided_slice %11 {offsets = [0, 16], sizes = [8, 8], strides = [1, 1]} : vector<8x32xf32> to vector<8x8xf32>
    %c0_43 = arith.constant 0 : index
    %c2_44 = arith.constant 2 : index
    %c0_45 = arith.constant 0 : index
    %c0_46 = arith.constant 0 : index
    %43 = vector.load %arg9[%c0_43, %c2_44, %c0_45, %c0_46] : memref<1x4x8x8xf32, #tpu.memory_space<vmem>>, vector<1x1x8x8xf32>
    %44 = vector.shape_cast %43 : vector<1x1x8x8xf32> to vector<8x8xf32>
    %45 = vector.shape_cast %42 : vector<8x8xf32> to vector<1x1x8x8xf32>
    tpu.vector_store %arg9[%c0_43, %c2_44, %c0_45, %c0_46], %45 {strides = array<i32>} : memref<1x4x8x8xf32, #tpu.memory_space<vmem>>, vector<1x1x8x8xf32>,
    %46 = vector.extract_strided_slice %13 {offsets = [0, 16], sizes = [8, 8], strides = [1, 1]} : vector<8x32xf32> to vector<8x8xf32>
    %c0_47 = arith.constant 0 : index
    %c2_48 = arith.constant 2 : index
    %c0_49 = arith.constant 0 : index
    %c0_50 = arith.constant 0 : index
    %47 = vector.load %arg10[%c0_47, %c2_48, %c0_49, %c0_50] : memref<1x4x8x8xf32, #tpu.memory_space<vmem>>, vector<1x1x8x8xf32>
    %48 = vector.shape_cast %47 : vector<1x1x8x8xf32> to vector<8x8xf32>
    %49 = vector.shape_cast %46 : vector<8x8xf32> to vector<1x1x8x8xf32>
    tpu.vector_store %arg10[%c0_47, %c2_48, %c0_49, %c0_50], %49 {strides = array<i32>} : memref<1x4x8x8xf32, #tpu.memory_space<vmem>>, vector<1x1x8x8xf32>,
    %50 = vector.extract_strided_slice %9 {offsets = [0, 24], sizes = [8, 8], strides = [1, 1]} : vector<8x32xf32> to vector<8x8xf32>
    %c0_51 = arith.constant 0 : index
    %c3 = arith.constant 3 : index
    %c0_52 = arith.constant 0 : index
    %c0_53 = arith.constant 0 : index
    %51 = vector.load %arg8[%c0_51, %c3, %c0_52, %c0_53] : memref<1x4x8x8xf32, #tpu.memory_space<vmem>>, vector<1x1x8x8xf32>
    %52 = vector.shape_cast %51 : vector<1x1x8x8xf32> to vector<8x8xf32>
    %53 = vector.shape_cast %50 : vector<8x8xf32> to vector<1x1x8x8xf32>
    tpu.vector_store %arg8[%c0_51, %c3, %c0_52, %c0_53], %53 {strides = array<i32>} : memref<1x4x8x8xf32, #tpu.memory_space<vmem>>, vector<1x1x8x8xf32>,
    %54 = vector.extract_strided_slice %11 {offsets = [0, 24], sizes = [8, 8], strides = [1, 1]} : vector<8x32xf32> to vector<8x8xf32>
    %c0_54 = arith.constant 0 : index
    %c3_55 = arith.constant 3 : index
    %c0_56 = arith.constant 0 : index
    %c0_57 = arith.constant 0 : index
    %55 = vector.load %arg9[%c0_54, %c3_55, %c0_56, %c0_57] : memref<1x4x8x8xf32, #tpu.memory_space<vmem>>, vector<1x1x8x8xf32>
    %56 = vector.shape_cast %55 : vector<1x1x8x8xf32> to vector<8x8xf32>
    %57 = vector.shape_cast %54 : vector<8x8xf32> to vector<1x1x8x8xf32>
    tpu.vector_store %arg9[%c0_54, %c3_55, %c0_56, %c0_57], %57 {strides = array<i32>} : memref<1x4x8x8xf32, #tpu.memory_space<vmem>>, vector<1x1x8x8xf32>,
    %58 = vector.extract_strided_slice %13 {offsets = [0, 24], sizes = [8, 8], strides = [1, 1]} : vector<8x32xf32> to vector<8x8xf32>
    %c0_58 = arith.constant 0 : index
    %c3_59 = arith.constant 3 : index
    %c0_60 = arith.constant 0 : index
    %c0_61 = arith.constant 0 : index
    %59 = vector.load %arg10[%c0_58, %c3_59, %c0_60, %c0_61] : memref<1x4x8x8xf32, #tpu.memory_space<vmem>>, vector<1x1x8x8xf32>
    %60 = vector.shape_cast %59 : vector<1x1x8x8xf32> to vector<8x8xf32>
    %61 = vector.shape_cast %58 : vector<8x8xf32> to vector<1x1x8x8xf32>
    tpu.vector_store %arg10[%c0_58, %c3_59, %c0_60, %c0_61], %61 {strides = array<i32>} : memref<1x4x8x8xf32, #tpu.memory_space<vmem>>, vector<1x1x8x8xf32>,
    return
  }
  func.func @transform_0(%arg0: i32, %arg1: i32) -> (i32, i32, i32) {
    %c0_i32 = arith.constant 0 : i32
    %c0_i32_0 = arith.constant 0 : i32
    return %arg0, %arg1, %c0_i32 : i32, i32, i32
  }
  func.func @transform_1(%arg0: i32, %arg1: i32) -> (i32, i32, i32) {
    %c0_i32 = arith.constant 0 : i32
    %c0_i32_0 = arith.constant 0 : i32
    return %arg0, %arg1, %c0_i32 : i32, i32, i32
  }
  func.func @transform_2(%arg0: i32, %arg1: i32) -> (i32, i32, i32) {
    %c0_i32 = arith.constant 0 : i32
    %c0_i32_0 = arith.constant 0 : i32
    return %arg0, %arg1, %c0_i32 : i32, i32, i32
  }
  func.func @transform_3(%arg0: i32, %arg1: i32) -> (i32, i32) {
    %c0_i32 = arith.constant 0 : i32
    %c0_i32_0 = arith.constant 0 : i32
    %c0_i32_1 = arith.constant 0 : i32
    return %c0_i32, %c0_i32_0 : i32, i32
  }
  func.func @transform_4(%arg0: i32, %arg1: i32) -> (i32, i32) {
    %c0_i32 = arith.constant 0 : i32
    %c0_i32_0 = arith.constant 0 : i32
    %c0_i32_1 = arith.constant 0 : i32
    return %c0_i32, %c0_i32_0 : i32, i32
  }
  func.func @transform_5(%arg0: i32, %arg1: i32) -> (i32, i32) {
    %c0_i32 = arith.constant 0 : i32
    %c0_i32_0 = arith.constant 0 : i32
    %c0_i32_1 = arith.constant 0 : i32
    return %c0_i32, %c0_i32_0 : i32, i32
  }
  func.func @transform_6(%arg0: i32, %arg1: i32) -> (i32, i32, i32, i32) {
    %c0_i32 = arith.constant 0 : i32
    %c0_i32_0 = arith.constant 0 : i32
    %c0_i32_1 = arith.constant 0 : i32
    return %arg0, %c0_i32, %arg1, %c0_i32_0 : i32, i32, i32, i32
  }
  func.func @transform_7(%arg0: i32, %arg1: i32) -> (i32, i32, i32, i32) {
    %c0_i32 = arith.constant 0 : i32
    %c0_i32_0 = arith.constant 0 : i32
    %c0_i32_1 = arith.constant 0 : i32
    return %arg0, %c0_i32, %arg1, %c0_i32_0 : i32, i32, i32, i32
  }
  func.func @transform_8(%arg0: i32, %arg1: i32) -> (i32, i32, i32, i32) {
    %c0_i32 = arith.constant 0 : i32
    %c0_i32_0 = arith.constant 0 : i32
    %c0_i32_1 = arith.constant 0 : i32
    return %arg0, %c0_i32, %arg1, %c0_i32_0 : i32, i32, i32, i32
  }
}

</mosaic_0001>

<llo_original>
// kernel: tpu_custom_call.1
$region0: #{tpu_custom_call.1}
  #allocation0 [shape = 'u32[]', space=smem, size = 0x4, offset = 0x4, fixed_abs, tag = 'smem constant byte address 0x4 - core index']
  #allocation1 [shape = 'u32[144,128]{1,0:T(1,128)}', space=vmem, size = 0x12000, scoped, tag = 'internal scratch']
  %s0 = inlined_call_operand.hbm [shape: f32[2,8,32], index: 0, kind: input, shape index: {}]
  %s1 = inlined_call_operand.hbm [shape: f32[2,8,32], index: 1, kind: input, shape index: {}]
  %s2 = inlined_call_operand.hbm [shape: f32[2,8,32], index: 2, kind: input, shape index: {}]
  %s3 = inlined_call_operand.hbm [shape: f32[32,32], index: 3, kind: input, shape index: {}]
  %s4 = inlined_call_operand.hbm [shape: f32[32,32], index: 4, kind: input, shape index: {}]
  %s5 = inlined_call_operand.hbm [shape: f32[32,32], index: 5, kind: input, shape index: {}]
  %s6 = inlined_call_operand.hbm [shape: f32[2,4,8,8], index: 6, kind: output, shape index: {0}]
  %s7 = inlined_call_operand.hbm [shape: f32[2,4,8,8], index: 7, kind: output, shape index: {1}]
  %s8 = inlined_call_operand.hbm [shape: f32[2,4,8,8], index: 8, kind: output, shape index: {2}]
  %9 = xla_tuple %s6, %s7, %s8
  %s10 = sld [smem:[#allocation0]]
  $region97: #{tpu_custom_call.1} parent=0
    _
  %s12 = ssub.s32 1, %s10
  %s13 = scalar_select 0, %s12, %s10
  $region1: #{tpu_custom_call.1} parent=0
    #allocation2 [shape = 'u8[8192]{0}', space=vmem, size = 0x2000, scoped, tag = 'input window, operand 0']
    #allocation3 [shape = 's32[2]{0}', space=sflag, size = 0x8, scoped, tag = 'scoped memory for tpu_custom_call.1']
    #allocation4 [shape = 's32[2]{0}', space=sflag, size = 0x8, scoped, tag = 'scoped memory for tpu_custom_call.1']
    #allocation5 [shape = 'u8[8192]{0}', space=vmem, size = 0x2000, scoped, tag = 'input window, operand 1']
    #allocation6 [shape = 's32[2]{0}', space=sflag, size = 0x8, scoped, tag = 'scoped memory for tpu_custom_call.1']
    #allocation7 [shape = 'u8[8192]{0}', space=vmem, size = 0x2000, scoped, tag = 'input window, operand 2']
    #allocation8 [shape = 'u8[16384]{0}', space=vmem, size = 0x4000, scoped, tag = 'input window, operand 3, single buffered']
    #allocation9 [shape = 's32[1]{0}', space=sflag, size = 0x4, scoped, tag = 'scoped memory for tpu_custom_call.1']
    #allocation10 [shape = 'u8[16384]{0}', space=vmem, size = 0x4000, scoped, tag = 'input window, operand 4, single buffered']
    #allocation11 [shape = 'u8[16384]{0}', space=vmem, size = 0x4000, scoped, tag = 'input window, operand 5, single buffered']
    #allocation12 [shape = 's32[1]{0}', space=sflag, size = 0x4, scoped, tag = 'scoped memory for tpu_custom_call.1']
    #allocation13 [shape = 'u8[32768]{0}', space=vmem, size = 0x8000, scoped, tag = 'output window, operand 0']
    #allocation14 [shape = 'u8[32768]{0}', space=vmem, size = 0x8000, scoped, tag = 'output window, operand 1']
    #allocation15 [shape = 's32[2]{0}', space=sflag, size = 0x8, scoped, tag = 'scoped memory for tpu_custom_call.1']
    #allocation16 [shape = 'u8[32768]{0}', space=vmem, size = 0x8000, scoped, tag = 'output window, operand 2']
    %14 = vsyncpa [#allocation3], 0
    %s15 = scalar_lea.sflag [#allocation3], 1
    %16 = vsyncpa %s15, 0
    %17 = vsyncpa [#allocation6], 0
    %s18 = scalar_lea.sflag [#allocation6], 1
    %19 = vsyncpa %s18, 0
    %20 = vsyncpa [#allocation9], 0
    %21 = vsyncpa [#allocation12], 0
    %22 = vsyncpa [#allocation4], 0
    %s23 = scalar_lea.sflag [#allocation4], 1
    %24 = vsyncpa %s23, 0
    %25 = vsyncpa [#allocation15], 0
    %s26 = scalar_lea.sflag [#allocation15], 1
    %27 = vsyncpa %s26, 0
    loop: start=0, step=1, limit=4
    $region2: #{tpu_custom_call.1} parent=1 // loop_pre_header
      _
    $region3: #{tpu_custom_call.1} parent=1 // loop_header
      %s29 = sphi 0, %s33
      %p30 = scmp.ge.s32.totalorder %s29, 4
      %s36 = sphi 0, %s48
      %s37 = sphi 0, %s44
      %s38 = sphi 0, %s36
      %s39 = sphi 0, %s37
      %s40 = sphi 0, %s38
      %s41 = sphi 0, %s39
      %s53 = sphi 0, %s55
      %s56 = sphi 0, %s53
      %s57 = sphi 0, %s56
      %s73 = sphi 0, %s57
      %s81 = sphi 0, %s83
      %s84 = sphi 0, %s81
      %s85 = sphi 0, %s84
      %s101 = sphi 0, %s85
      %s109 = sphi 0, %s111
      %s112 = sphi 0, %s109
      %s113 = sphi 0, %s112
      %s129 = sphi 0, %s113
      %s133 = sphi 0, %s133
      %s135 = sphi 0, %s133
      %s136 = sphi 0, %s135
      %s150 = sphi 0, %s136
      %s154 = sphi 0, %s154
      %s156 = sphi 0, %s154
      %s157 = sphi 0, %s156
      %s171 = sphi 0, %s157
      %s175 = sphi 0, %s175
      %s177 = sphi 0, %s175
      %s178 = sphi 0, %s177
      %s192 = sphi 0, %s178
      %s200 = sphi 0, %s202
      %s203 = sphi 0, %s200
      %s204 = sphi 0, %s203
      %s220 = sphi 0, %s204
      %s228 = sphi 0, %s230
      %s231 = sphi 0, %s228
      %s232 = sphi 0, %s231
      %s248 = sphi 0, %s232
      %s256 = sphi 0, %s258
      %s259 = sphi 0, %s256
      %s260 = sphi 0, %s259
      %s276 = sphi 0, %s260
    $region4: #{tpu_custom_call.1} parent=1 // loop_header_branch
      %32 = sbr.rel (%p30) target = $region8
    $region5: #{tpu_custom_call.1} parent=1 // loop_body
      %s34 = ssub.s32 %s29, 1
      %s35 = ssub.s32 %s29, 2
      %s42 = sadd.s32 1, %s37
      %p43 = scmp.ge.s32.totalorder %s42, 1
      %s44 = scalar_select %p43, 0, %s42
      %s45 = sadd.s32 1, %s36
      %s46 = scalar_select %p43, %s45, %s36
      %p47 = scmp.ge.s32.totalorder %s46, 2
      %s48 = scalar_select %p47, 0, %s46
      %s49 = ssub.s32 %s36, %s48
      %s50 = ssub.s32 %s37, %s44
      %s51 = sor.u32 %s49, %s50
      %p52 = scmp.eq.s32.totalorder %s51, 0
      %s54 = sadd.s32 %s53, 1
      %s55 = scalar_select %p52, %s53, %s54
      %p58 = pneg %p52
      %p59 = scmp.eq.s32.totalorder %s29, 1
      %p60 = por %p58, %p59
      %p61 = scmp.ne.s32.totalorder %s53, %s56
      %p62 = scmp.eq.s32.totalorder %s29, 0
      %p63 = por %p61, %p62
      %p64 = scmp.ne.s32.totalorder %s53, %s56
      %p65 = scmp.eq.s32.totalorder %s34, 1
      %p66 = por %p64, %p65
      %p67 = scmp.ne.s32.totalorder %s56, %s57
      %p68 = scmp.eq.s32.totalorder %s34, 0
      %p69 = por %p67, %p68
      %p70 = scmp.ne.s32.totalorder %s56, %s57
      %p71 = scmp.eq.s32.totalorder %s35, 1
      %p72 = por %p70, %p71
      %p74 = scmp.ne.s32.totalorder %s57, %s73
      %p75 = scmp.eq.s32.totalorder %s35, 0
      %p76 = por %p74, %p75
      %s77 = ssub.s32 %s36, %s48
      %s78 = ssub.s32 %s37, %s44
      %s79 = sor.u32 %s77, %s78
      %p80 = scmp.eq.s32.totalorder %s79, 0
      %s82 = sadd.s32 %s81, 1
      %s83 = scalar_select %p80, %s81, %s82
      %p86 = pneg %p80
      %p87 = scmp.eq.s32.totalorder %s29, 1
      %p88 = por %p86, %p87
      %p89 = scmp.ne.s32.totalorder %s81, %s84
      %p90 = scmp.eq.s32.totalorder %s29, 0
      %p91 = por %p89, %p90
      %p92 = scmp.ne.s32.totalorder %s81, %s84
      %p93 = scmp.eq.s32.totalorder %s34, 1
      %p94 = por %p92, %p93
      %p95 = scmp.ne.s32.totalorder %s84, %s85
      %p96 = scmp.eq.s32.totalorder %s34, 0
      %p97 = por %p95, %p96
      %p98 = scmp.ne.s32.totalorder %s84, %s85
      %p99 = scmp.eq.s32.totalorder %s35, 1
      %p100 = por %p98, %p99
      %p102 = scmp.ne.s32.totalorder %s85, %s101
      %p103 = scmp.eq.s32.totalorder %s35, 0
      %p104 = por %p102, %p103
      %s105 = ssub.s32 %s36, %s48
      %s106 = ssub.s32 %s37, %s44
      %s107 = sor.u32 %s105, %s106
      %p108 = scmp.eq.s32.totalorder %s107, 0
      %s110 = sadd.s32 %s109, 1
      %s111 = scalar_select %p108, %s109, %s110
      %p114 = pneg %p108
      %p115 = scmp.eq.s32.totalorder %s29, 1
      %p116 = por %p114, %p115
      %p117 = scmp.ne.s32.totalorder %s109, %s112
      %p118 = scmp.eq.s32.totalorder %s29, 0
      %p119 = por %p117, %p118
      %p120 = scmp.ne.s32.totalorder %s109, %s112
      %p121 = scmp.eq.s32.totalorder %s34, 1
      %p122 = por %p120, %p121
      %p123 = scmp.ne.s32.totalorder %s112, %s113
      %p124 = scmp.eq.s32.totalorder %s34, 0
      %p125 = por %p123, %p124
      %p126 = scmp.ne.s32.totalorder %s112, %s113
      %p127 = scmp.eq.s32.totalorder %s35, 1
      %p128 = por %p126, %p127
      %p130 = scmp.ne.s32.totalorder %s113, %s129
      %p131 = scmp.eq.s32.totalorder %s35, 0
      %p132 = por %p130, %p131
      %s134 = sadd.s32 %s133, 1
      %p137 = scmp.eq.s32.totalorder %s29, 1
      %p138 = scmp.ne.s32.totalorder %s133, %s135
      %p139 = scmp.eq.s32.totalorder %s29, 0
      %p140 = por %p138, %p139
      %p141 = scmp.ne.s32.totalorder %s133, %s135
      %p142 = scmp.eq.s32.totalorder %s34, 1
      %p143 = por %p141, %p142
      %p144 = scmp.ne.s32.totalorder %s135, %s136
      %p145 = scmp.eq.s32.totalorder %s34, 0
      %p146 = por %p144, %p145
      %p147 = scmp.ne.s32.totalorder %s135, %s136
      %p148 = scmp.eq.s32.totalorder %s35, 1
      %p149 = por %p147, %p148
      %p151 = scmp.ne.s32.totalorder %s136, %s150
      %p152 = scmp.eq.s32.totalorder %s35, 0
      %p153 = por %p151, %p152
      %s155 = sadd.s32 %s154, 1
      %p158 = scmp.eq.s32.totalorder %s29, 1
      %p159 = scmp.ne.s32.totalorder %s154, %s156
      %p160 = scmp.eq.s32.totalorder %s29, 0
      %p161 = por %p159, %p160
      %p162 = scmp.ne.s32.totalorder %s154, %s156
      %p163 = scmp.eq.s32.totalorder %s34, 1
      %p164 = por %p162, %p163
      %p165 = scmp.ne.s32.totalorder %s156, %s157
      %p166 = scmp.eq.s32.totalorder %s34, 0
      %p167 = por %p165, %p166
      %p168 = scmp.ne.s32.totalorder %s156, %s157
      %p169 = scmp.eq.s32.totalorder %s35, 1
      %p170 = por %p168, %p169
      %p172 = scmp.ne.s32.totalorder %s157, %s171
      %p173 = scmp.eq.s32.totalorder %s35, 0
      %p174 = por %p172, %p173
      %s176 = sadd.s32 %s175, 1
      %p179 = scmp.eq.s32.totalorder %s29, 1
      %p180 = scmp.ne.s32.totalorder %s175, %s177
      %p181 = scmp.eq.s32.totalorder %s29, 0
      %p182 = por %p180, %p181
      %p183 = scmp.ne.s32.totalorder %s175, %s177
      %p184 = scmp.eq.s32.totalorder %s34, 1
      %p185 = por %p183, %p184
      %p186 = scmp.ne.s32.totalorder %s177, %s178
      %p187 = scmp.eq.s32.totalorder %s34, 0
      %p188 = por %p186, %p187
      %p189 = scmp.ne.s32.totalorder %s177, %s178
      %p190 = scmp.eq.s32.totalorder %s35, 1
      %p191 = por %p189, %p190
      %p193 = scmp.ne.s32.totalorder %s178, %s192
      %p194 = scmp.eq.s32.totalorder %s35, 0
      %p195 = por %p193, %p194
      %s196 = ssub.s32 %s36, %s48
      %s197 = ssub.s32 %s37, %s44
      %s198 = sor.u32 %s196, %s197
      %p199 = scmp.eq.s32.totalorder %s198, 0
      %s201 = sadd.s32 %s200, 1
      %s202 = scalar_select %p199, %s200, %s201
      %p205 = pneg %p199
      %p206 = scmp.eq.s32.totalorder %s29, 1
      %p207 = por %p205, %p206
      %p208 = scmp.ne.s32.totalorder %s200, %s203
      %p209 = scmp.eq.s32.totalorder %s29, 0
      %p210 = por %p208, %p209
      %p211 = scmp.ne.s32.totalorder %s200, %s203
      %p212 = scmp.eq.s32.totalorder %s34, 1
      %p213 = por %p211, %p212
      %p214 = scmp.ne.s32.totalorder %s203, %s204
      %p215 = scmp.eq.s32.totalorder %s34, 0
      %p216 = por %p214, %p215
      %p217 = scmp.ne.s32.totalorder %s203, %s204
      %p218 = scmp.eq.s32.totalorder %s35, 1
      %p219 = por %p217, %p218
      %p221 = scmp.ne.s32.totalorder %s204, %s220
      %p222 = scmp.eq.s32.totalorder %s35, 0
      %p223 = por %p221, %p222
      %s224 = ssub.s32 %s36, %s48
      %s225 = ssub.s32 %s37, %s44
      %s226 = sor.u32 %s224, %s225
      %p227 = scmp.eq.s32.totalorder %s226, 0
      %s229 = sadd.s32 %s228, 1
      %s230 = scalar_select %p227, %s228, %s229
      %p233 = pneg %p227
      %p234 = scmp.eq.s32.totalorder %s29, 1
      %p235 = por %p233, %p234
      %p236 = scmp.ne.s32.totalorder %s228, %s231
      %p237 = scmp.eq.s32.totalorder %s29, 0
      %p238 = por %p236, %p237
      %p239 = scmp.ne.s32.totalorder %s228, %s231
      %p240 = scmp.eq.s32.totalorder %s34, 1
      %p241 = por %p239, %p240
      %p242 = scmp.ne.s32.totalorder %s231, %s232
      %p243 = scmp.eq.s32.totalorder %s34, 0
      %p244 = por %p242, %p243
      %p245 = scmp.ne.s32.totalorder %s231, %s232
      %p246 = scmp.eq.s32.totalorder %s35, 1
      %p247 = por %p245, %p246
      %p249 = scmp.ne.s32.totalorder %s232, %s248
      %p250 = scmp.eq.s32.totalorder %s35, 0
      %p251 = por %p249, %p250
      %s252 = ssub.s32 %s36, %s48
      %s253 = ssub.s32 %s37, %s44
      %s254 = sor.u32 %s252, %s253
      %p255 = scmp.eq.s32.totalorder %s254, 0
      %s257 = sadd.s32 %s256, 1
      %s258 = scalar_select %p255, %s256, %s257
      %p261 = pneg %p255
      %p262 = scmp.eq.s32.totalorder %s29, 1
      %p263 = por %p261, %p262
      %p264 = scmp.ne.s32.totalorder %s256, %s259
      %p265 = scmp.eq.s32.totalorder %s29, 0
      %p266 = por %p264, %p265
      %p267 = scmp.ne.s32.totalorder %s256, %s259
      %p268 = scmp.eq.s32.totalorder %s34, 1
      %p269 = por %p267, %p268
      %p270 = scmp.ne.s32.totalorder %s259, %s260
      %p271 = scmp.eq.s32.totalorder %s34, 0
      %p272 = por %p270, %p271
      %p273 = scmp.ne.s32.totalorder %s259, %s260
      %p274 = scmp.eq.s32.totalorder %s35, 1
      %p275 = por %p273, %p274
      %p277 = scmp.ne.s32.totalorder %s260, %s276
      %p278 = scmp.eq.s32.totalorder %s35, 0
      %p279 = por %p277, %p278
      %p280 = scmp.le.s32.totalorder 1, %s29
      %p281 = scmp.lt.s32.totalorder %s29, 3
      %p282 = pnand %p280, %p281
      %p283 = pneg %p282
      // Predicated region
      $region9: #{tpu_custom_call.1} parent=5 // pred_check
        _
      $region10: #{tpu_custom_call.1} parent=5 // pred_check_branch
        %285 = sbr.rel (%p282) target = $region12
      $region11: #{tpu_custom_call.1} parent=5 // pred_region
        %s286 = ssub.s32 %s29, 1
        // Predicated region
        $region13: #{tpu_custom_call.1} parent=11 // pred_check
          %p287 = pneg %p146
        $region14: #{tpu_custom_call.1} parent=11 // pred_check_branch
          %289 = sbr.rel (%p287) target = $region16
        $region15: #{tpu_custom_call.1} parent=11 // pred_region
          %s291 = ssub.s32 512, 512
          %292 = vsyncadd [#allocation9], %s291
          %s293 = sshll.u32 [#allocation8], 4
          %s294 = int_to_ptr.vmem [resolvable:$true] %s293
          %299 = dma.hbm_to_vmem [thread:$0]  %s3, 512, %s294, [#allocation9], 128, 128, 8
        $region16: #{tpu_custom_call.1} parent=11 // pred_fallthru
          _
        // Predicated region
        $region17: #{tpu_custom_call.1} parent=11 // pred_check
          %p300 = pneg %p167
        $region18: #{tpu_custom_call.1} parent=11 // pred_check_branch
          %302 = sbr.rel (%p300) target = $region20
        $region19: #{tpu_custom_call.1} parent=11 // pred_region
          %s304 = ssub.s32 512, 512
          %305 = vsyncadd [#allocation9], %s304
          %s306 = sshll.u32 [#allocation10], 4
          %s307 = int_to_ptr.vmem [resolvable:$true] %s306
          %312 = dma.hbm_to_vmem [thread:$0]  %s4, 512, %s307, [#allocation9], 128, 128, 8
        $region20: #{tpu_custom_call.1} parent=11 // pred_fallthru
          _
        // Predicated region
        $region21: #{tpu_custom_call.1} parent=11 // pred_check
          %p313 = pneg %p188
        $region22: #{tpu_custom_call.1} parent=11 // pred_check_branch
          %315 = sbr.rel (%p313) target = $region24
        $region23: #{tpu_custom_call.1} parent=11 // pred_region
          %s317 = ssub.s32 512, 512
          %318 = vsyncadd [#allocation12], %s317
          %s319 = sshll.u32 [#allocation11], 4
          %s320 = int_to_ptr.vmem [resolvable:$true] %s319
          %325 = dma.hbm_to_vmem [thread:$0]  %s5, 512, %s320, [#allocation12], 128, 128, 8
        $region24: #{tpu_custom_call.1} parent=11 // pred_fallthru
          _
      $region12: #{tpu_custom_call.1} parent=5 // pred_fallthru
        _
      %p326 = scmp.lt.s32.totalorder %s29, 2
      // Predicated region
      $region25: #{tpu_custom_call.1} parent=5 // pred_check
        %p327 = pneg %p326
      $region26: #{tpu_custom_call.1} parent=5 // pred_check_branch
        %329 = sbr.rel (%p327) target = $region28
      $region27: #{tpu_custom_call.1} parent=5 // pred_region
        // Predicated region
        $region29: #{tpu_custom_call.1} parent=27 // pred_check
          %p330 = pneg %p63
        $region30: #{tpu_custom_call.1} parent=27 // pred_check_branch
          %332 = sbr.rel (%p330) target = $region32
        $region31: #{tpu_custom_call.1} parent=27 // pred_region
          %s333 = sand.u32 %s53, 1
          %s334 = scalar_lea.sflag [#allocation3], %s333
          %s335 = sand.u32 %s53, 1
          %s336 = smul.addr %s335, 8
          %s337 = scalar_lea.vmem [#allocation2], %s336
          %s339 = ssub.s32 128, 128
          %340 = vsyncadd %s334, %s339
          %s341 = sadd.s32 %s37, %s36
          %s342 = smul.addr %s341, 128
          %s343 = scalar_lea.hbm %s0, %s342
          %s345 = sshll.u32 %s337, 4
          %s346 = int_to_ptr.vmem [resolvable:$true] %s345
          %348 = dma.hbm_to_vmem [thread:$0]  %s343, 128, %s346, %s334
        $region32: #{tpu_custom_call.1} parent=27 // pred_fallthru
          _
        // Predicated region
        $region33: #{tpu_custom_call.1} parent=27 // pred_check
          %p349 = pneg %p91
        $region34: #{tpu_custom_call.1} parent=27 // pred_check_branch
          %351 = sbr.rel (%p349) target = $region36
        $region35: #{tpu_custom_call.1} parent=27 // pred_region
          %s352 = sand.u32 %s29, 1
          %s353 = scalar_lea.sflag [#allocation6], %s352
          %s354 = sand.u32 %s81, 1
          %s355 = smul.addr %s354, 8
          %s356 = scalar_lea.vmem [#allocation5], %s355
          %s358 = ssub.s32 128, 128
          %359 = vsyncadd %s353, %s358
          %s360 = sadd.s32 %s37, %s36
          %s361 = smul.addr %s360, 128
          %s362 = scalar_lea.hbm %s1, %s361
          %s364 = sshll.u32 %s356, 4
          %s365 = int_to_ptr.vmem [resolvable:$true] %s364
          %367 = dma.hbm_to_vmem [thread:$0]  %s362, 128, %s365, %s353
        $region36: #{tpu_custom_call.1} parent=27 // pred_fallthru
          _
        // Predicated region
        $region37: #{tpu_custom_call.1} parent=27 // pred_check
          %p368 = pneg %p119
        $region38: #{tpu_custom_call.1} parent=27 // pred_check_branch
          %370 = sbr.rel (%p368) target = $region40
        $region39: #{tpu_custom_call.1} parent=27 // pred_region
          %s371 = sand.u32 %s29, 1
          %s372 = scalar_lea.sflag [#allocation6], %s371
          %s373 = sand.u32 %s109, 1
          %s374 = smul.addr %s373, 8
          %s375 = scalar_lea.vmem [#allocation7], %s374
          %s377 = ssub.s32 128, 128
          %378 = vsyncadd %s372, %s377
          %s379 = sadd.s32 %s37, %s36
          %s380 = smul.addr %s379, 128
          %s381 = scalar_lea.hbm %s2, %s380
          %s383 = sshll.u32 %s375, 4
          %s384 = int_to_ptr.vmem [resolvable:$true] %s383
          %386 = dma.hbm_to_vmem [thread:$0]  %s381, 128, %s384, %s372
        $region40: #{tpu_custom_call.1} parent=27 // pred_fallthru
          _
      $region28: #{tpu_custom_call.1} parent=5 // pred_fallthru
        _
      %p387 = scmp.le.s32.totalorder 1, %s29
      %p388 = scmp.lt.s32.totalorder %s29, 3
      %p389 = pnand %p387, %p388
      %p390 = pneg %p389
      // Predicated region
      $region41: #{tpu_custom_call.1} parent=5 // pred_check
        _
      $region42: #{tpu_custom_call.1} parent=5 // pred_check_branch
        %392 = sbr.rel (%p389) target = $region44
      $region43: #{tpu_custom_call.1} parent=5 // pred_region
        %s393 = ssub.s32 %s29, 1
        %s394 = sand.u32 %s56, 1
        %s395 = scalar_lea.sflag [#allocation3], %s394
        %s396 = sand.u32 %s56, 1
        %s397 = smul.addr %s396, 8
        %s398 = scalar_lea.vmem [#allocation2], %s397
        // Predicated region
        $region45: #{tpu_custom_call.1} parent=43 // pred_check
          %p399 = pneg %p69
        $region46: #{tpu_custom_call.1} parent=43 // pred_check_branch
          %401 = sbr.rel (%p399) target = $region48
        $region47: #{tpu_custom_call.1} parent=43 // pred_region
          %402 = dma.done %s395, 128
        $region48: #{tpu_custom_call.1} parent=43 // pred_fallthru
          _
        %s403 = sand.u32 %s34, 1
        %s404 = scalar_lea.sflag [#allocation6], %s403
        %s405 = sand.u32 %s84, 1
        %s406 = smul.addr %s405, 8
        %s407 = scalar_lea.vmem [#allocation5], %s406
        // Predicated region
        $region49: #{tpu_custom_call.1} parent=43 // pred_check
          %p408 = pneg %p97
        $region50: #{tpu_custom_call.1} parent=43 // pred_check_branch
          %410 = sbr.rel (%p408) target = $region52
        $region51: #{tpu_custom_call.1} parent=43 // pred_region
          %411 = dma.done %s404, 128
        $region52: #{tpu_custom_call.1} parent=43 // pred_fallthru
          _
        %s412 = sand.u32 %s34, 1
        %s413 = scalar_lea.sflag [#allocation6], %s412
        %s414 = sand.u32 %s112, 1
        %s415 = smul.addr %s414, 8
        %s416 = scalar_lea.vmem [#allocation7], %s415
        // Predicated region
        $region53: #{tpu_custom_call.1} parent=43 // pred_check
          %p417 = pneg %p125
        $region54: #{tpu_custom_call.1} parent=43 // pred_check_branch
          %419 = sbr.rel (%p417) target = $region56
        $region55: #{tpu_custom_call.1} parent=43 // pred_region
          %420 = dma.done %s413, 128
        $region56: #{tpu_custom_call.1} parent=43 // pred_fallthru
          _
        // Predicated region
        $region57: #{tpu_custom_call.1} parent=43 // pred_check
          %p421 = pneg %p146
        $region58: #{tpu_custom_call.1} parent=43 // pred_check_branch
          %423 = sbr.rel (%p421) target = $region60
        $region59: #{tpu_custom_call.1} parent=43 // pred_region
          %424 = dma.done [#allocation9], 512
        $region60: #{tpu_custom_call.1} parent=43 // pred_fallthru
          _
        // Predicated region
        $region61: #{tpu_custom_call.1} parent=43 // pred_check
          %p425 = pneg %p167
        $region62: #{tpu_custom_call.1} parent=43 // pred_check_branch
          %427 = sbr.rel (%p425) target = $region64
        $region63: #{tpu_custom_call.1} parent=43 // pred_region
          %428 = dma.done [#allocation9], 512
        $region64: #{tpu_custom_call.1} parent=43 // pred_fallthru
          _
        // Predicated region
        $region65: #{tpu_custom_call.1} parent=43 // pred_check
          %p429 = pneg %p188
        $region66: #{tpu_custom_call.1} parent=43 // pred_check_branch
          %431 = sbr.rel (%p429) target = $region68
        $region67: #{tpu_custom_call.1} parent=43 // pred_region
          %432 = dma.done [#allocation12], 512
        $region68: #{tpu_custom_call.1} parent=43 // pred_fallthru
          _
        %s433 = sand.u32 %s56, 1
        %s434 = scalar_lea.sflag [#allocation3], %s433
        %s435 = sand.u32 %s56, 1
        %s436 = smul.addr %s435, 8
        %s437 = scalar_lea.vmem [#allocation2], %s436
        %p438 = pneg %p69
        %p439 = pneg %p66
        %s440 = sand.u32 %s34, 1
        %s441 = scalar_lea.sflag [#allocation6], %s440
        %s442 = sand.u32 %s84, 1
        %s443 = smul.addr %s442, 8
        %s444 = scalar_lea.vmem [#allocation5], %s443
        %p445 = pneg %p97
        %p446 = pneg %p94
        %s447 = sand.u32 %s34, 1
        %s448 = scalar_lea.sflag [#allocation6], %s447
        %s449 = sand.u32 %s112, 1
        %s450 = smul.addr %s449, 8
        %s451 = scalar_lea.vmem [#allocation7], %s450
        %p452 = pneg %p125
        %p453 = pneg %p122
        %p454 = pneg %p146
        %p455 = pneg %p143
        %p456 = pneg %p167
        %p457 = pneg %p164
        %p458 = pneg %p188
        %p459 = pneg %p185
        %p460 = pneg %p216
        %p461 = pneg %p213
        %s462 = sand.u32 %s203, 1
        %s463 = scalar_lea.sflag [#allocation4], %s462
        %s464 = sand.u32 %s203, 1
        %s465 = smul.addr %s464, 32
        %s466 = scalar_lea.vmem [#allocation13], %s465
        %p467 = pneg %p244
        %p468 = pneg %p241
        %s469 = sand.u32 %s34, 1
        %s470 = scalar_lea.sflag [#allocation15], %s469
        %s471 = sand.u32 %s231, 1
        %s472 = smul.addr %s471, 32
        %s473 = scalar_lea.vmem [#allocation14], %s472
        %p474 = pneg %p272
        %p475 = pneg %p269
        %s476 = sand.u32 %s34, 1
        %s477 = scalar_lea.sflag [#allocation15], %s476
        %s478 = sand.u32 %s259, 1
        %s479 = smul.addr %s478, 32
        %s480 = scalar_lea.vmem [#allocation16], %s479
        %v481 = vld [vmem:[%s398] sm:$0xff]
        %v482 = vld [vmem:[%s407] sm:$0xff]
        %v483 = vld [vmem:[%s416] sm:$0xff]
        %v484 = vld [vmem:[#allocation8] sm:$0xff]
        %v485 = vld [vmem:[#allocation8 + $0x8] sm:$0xff]
        %v486 = vld [vmem:[#allocation8 + $0x10] sm:$0xff]
        %v487 = vld [vmem:[#allocation8 + $0x18] sm:$0xff]
        %vm488 = vcmask 261120
        %v490 = vsel %vm488, %v481, 0
        %492 = vmatprep.subr.mxu0 0.0
        %493 = vmatpush1.msra.mxu0 %v484
        %494 = vmatprep.subr.mxu0 0.0
        %495 = vmatpush1.msra.mxu0 %v485
        %496 = vmatprep.subr.mxu0 0.0
        %497 = vmatpush1.msra.mxu0 %v486
        %498 = vmatprep.subr.mxu0 0.0
        %499 = vmatpush1.msra.mxu0 %v487
        %500 = vmatprep.subr.mxu0 0.0
        %501 = vmatpush1.msra.mxu0 0.0
        %502 = vmatprep.subr.mxu0 0.0
        %503 = vmatpush1.msra.mxu0 0.0
        %504 = vmatprep.subr.mxu0 0.0
        %505 = vmatpush1.msra.mxu0 0.0
        %506 = vmatprep.subr.mxu0 0.0
        %507 = vmatpush1.msra.mxu0 0.0
        %508 = vmatprep.subr.mxu0 0.0
        %509 = vmatpush1.msra.mxu0 0.0
        %510 = vmatprep.subr.mxu0 0.0
        %511 = vmatpush1.msra.mxu0 0.0
        %512 = vmatprep.subr.mxu0 0.0
        %513 = vmatpush1.msra.mxu0 0.0
        %514 = vmatprep.subr.mxu0 0.0
        %515 = vmatpush1.msra.mxu0 0.0
        %516 = vmatprep.subr.mxu0 0.0
        %517 = vmatpush1.msra.mxu0 0.0
        %518 = vmatprep.subr.mxu0 0.0
        %519 = vmatpush1.msra.mxu0 0.0
        %520 = vmatprep.subr.mxu0 0.0
        %521 = vmatpush1.msra.mxu0 0.0
        %522 = vmatprep.subr.mxu0 0.0
        %523 = vmatpush1.msra.mxu0 0.0
        %524 = vmatprep.subr.mxu0 0.0
        %525 = vmatpush1.msra.mxu0 0.0
        %526 = vmatprep.subr.mxu0 0.0
        %527 = vmatpush1.msra.mxu0 0.0
        %528 = vmatprep.subr.mxu0 0.0
        %529 = vmatpush1.msra.mxu0 0.0
        %530 = vmatprep.subr.mxu0 0.0
        %531 = vmatpush1.msra.mxu0 0.0
        %532 = vmatprep.subr.mxu0 0.0
        %533 = vmatpush1.msra.mxu0 0.0
        %534 = vmatprep.subr.mxu0 0.0
        %535 = vmatpush1.msra.mxu0 0.0
        %536 = vmatprep.subr.mxu0 0.0
        %537 = vmatpush1.msra.mxu0 0.0
        %538 = vmatprep.subr.mxu0 0.0
        %539 = vmatpush1.msra.mxu0 0.0
        %540 = vmatprep.subr.mxu0 0.0
        %541 = vmatpush1.msra.mxu0 0.0
        %542 = vmatprep.subr.mxu0 0.0
        %543 = vmatpush1.msra.mxu0 0.0
        %544 = vmatprep.subr.mxu0 0.0
        %545 = vmatpush1.msra.mxu0 0.0
        %546 = vmatprep.subr.mxu0 0.0
        %547 = vmatpush1.msra.mxu0 0.0
        %548 = vmatprep.subr.mxu0 0.0
        %549 = vmatpush1.msra.mxu0 0.0
        %550 = vmatprep.subr.mxu0 0.0
        %551 = vmatpush1.msra.mxu0 0.0
        %552 = vmatprep.subr.mxu0 0.0
        %553 = vmatpush1.msra.mxu0 0.0
        %554 = vmatprep.subr.mxu0 0.0
        %555 = vmatpush1.msra.mxu0 0.0
        %556 = vmatprep.mubr.f32.mxu0 0.0
        %557 = vmatmul.mubr.f32.gmra.mrb[0].mxu0 %v490
        %v558 = vpop.f32.mrb[0].mxu0
        %v559 = vadd.f32 0.0, %v558
        %v560 = vpop.f32.mrb[0].mxu0
        %561 = vdwg.mxu0
        %v562 = vmul.f32 %v559, 0.35355338
        %v563 = vld [vmem:[#allocation10] sm:$0xff]
        %v564 = vld [vmem:[#allocation10 + $0x8] sm:$0xff]
        %v565 = vld [vmem:[#allocation10 + $0x10] sm:$0xff]
        %v566 = vld [vmem:[#allocation10 + $0x18] sm:$0xff]
        %v568 = vsel %vm488, %v482, 0
        %570 = vmatprep.subr.mxu0 0.0
        %571 = vmatpush1.msra.mxu0 %v563
        %572 = vmatprep.subr.mxu0 0.0
        %573 = vmatpush1.msra.mxu0 %v564
        %574 = vmatprep.subr.mxu0 0.0
        %575 = vmatpush1.msra.mxu0 %v565
        %576 = vmatprep.subr.mxu0 0.0
        %577 = vmatpush1.msra.mxu0 %v566
        %578 = vmatprep.subr.mxu0 0.0
        %579 = vmatpush1.msra.mxu0 0.0
        %580 = vmatprep.subr.mxu0 0.0
        %581 = vmatpush1.msra.mxu0 0.0
        %582 = vmatprep.subr.mxu0 0.0
        %583 = vmatpush1.msra.mxu0 0.0
        %584 = vmatprep.subr.mxu0 0.0
        %585 = vmatpush1.msra.mxu0 0.0
        %586 = vmatprep.subr.mxu0 0.0
        %587 = vmatpush1.msra.mxu0 0.0
        %588 = vmatprep.subr.mxu0 0.0
        %589 = vmatpush1.msra.mxu0 0.0
        %590 = vmatprep.subr.mxu0 0.0
        %591 = vmatpush1.msra.mxu0 0.0
        %592 = vmatprep.subr.mxu0 0.0
        %593 = vmatpush1.msra.mxu0 0.0
        %594 = vmatprep.subr.mxu0 0.0
        %595 = vmatpush1.msra.mxu0 0.0
        %596 = vmatprep.subr.mxu0 0.0
        %597 = vmatpush1.msra.mxu0 0.0
        %598 = vmatprep.subr.mxu0 0.0
        %599 = vmatpush1.msra.mxu0 0.0
        %600 = vmatprep.subr.mxu0 0.0
        %601 = vmatpush1.msra.mxu0 0.0
        %602 = vmatprep.subr.mxu0 0.0
        %603 = vmatpush1.msra.mxu0 0.0
        %604 = vmatprep.subr.mxu0 0.0
        %605 = vmatpush1.msra.mxu0 0.0
        %606 = vmatprep.subr.mxu0 0.0
        %607 = vmatpush1.msra.mxu0 0.0
        %608 = vmatprep.subr.mxu0 0.0
        %609 = vmatpush1.msra.mxu0 0.0
        %610 = vmatprep.subr.mxu0 0.0
        %611 = vmatpush1.msra.mxu0 0.0
        %612 = vmatprep.subr.mxu0 0.0
        %613 = vmatpush1.msra.mxu0 0.0
        %614 = vmatprep.subr.mxu0 0.0
        %615 = vmatpush1.msra.mxu0 0.0
        %616 = vmatprep.subr.mxu0 0.0
        %617 = vmatpush1.msra.mxu0 0.0
        %618 = vmatprep.subr.mxu0 0.0
        %619 = vmatpush1.msra.mxu0 0.0
        %620 = vmatprep.subr.mxu0 0.0
        %621 = vmatpush1.msra.mxu0 0.0
        %622 = vmatprep.subr.mxu0 0.0
        %623 = vmatpush1.msra.mxu0 0.0
        %624 = vmatprep.subr.mxu0 0.0
        %625 = vmatpush1.msra.mxu0 0.0
        %626 = vmatprep.subr.mxu0 0.0
        %627 = vmatpush1.msra.mxu0 0.0
        %628 = vmatprep.subr.mxu0 0.0
        %629 = vmatpush1.msra.mxu0 0.0
        %630 = vmatprep.subr.mxu0 0.0
        %631 = vmatpush1.msra.mxu0 0.0
        %632 = vmatprep.subr.mxu0 0.0
        %633 = vmatpush1.msra.mxu0 0.0
        %634 = vmatprep.mubr.f32.mxu0 0.0
        %635 = vmatmul.mubr.f32.gmra.mrb[0].mxu0 %v568
        %v636 = vpop.f32.mrb[0].mxu0
        %v637 = vadd.f32 0.0, %v636
        %v638 = vpop.f32.mrb[0].mxu0
        %639 = vdwg.mxu0
        %v640 = vld [vmem:[#allocation11] sm:$0xff]
        %v641 = vld [vmem:[#allocation11 + $0x8] sm:$0xff]
        %v642 = vld [vmem:[#allocation11 + $0x10] sm:$0xff]
        %v643 = vld [vmem:[#allocation11 + $0x18] sm:$0xff]
        %v645 = vsel %vm488, %v483, 0
        %647 = vmatprep.subr.mxu0 0.0
        %648 = vmatpush1.msra.mxu0 %v640
        %649 = vmatprep.subr.mxu0 0.0
        %650 = vmatpush1.msra.mxu0 %v641
        %651 = vmatprep.subr.mxu0 0.0
        %652 = vmatpush1.msra.mxu0 %v642
        %653 = vmatprep.subr.mxu0 0.0
        %654 = vmatpush1.msra.mxu0 %v643
        %655 = vmatprep.subr.mxu0 0.0
        %656 = vmatpush1.msra.mxu0 0.0
        %657 = vmatprep.subr.mxu0 0.0
        %658 = vmatpush1.msra.mxu0 0.0
        %659 = vmatprep.subr.mxu0 0.0
        %660 = vmatpush1.msra.mxu0 0.0
        %661 = vmatprep.subr.mxu0 0.0
        %662 = vmatpush1.msra.mxu0 0.0
        %663 = vmatprep.subr.mxu0 0.0
        %664 = vmatpush1.msra.mxu0 0.0
        %665 = vmatprep.subr.mxu0 0.0
        %666 = vmatpush1.msra.mxu0 0.0
        %667 = vmatprep.subr.mxu0 0.0
        %668 = vmatpush1.msra.mxu0 0.0
        %669 = vmatprep.subr.mxu0 0.0
        %670 = vmatpush1.msra.mxu0 0.0
        %671 = vmatprep.subr.mxu0 0.0
        %672 = vmatpush1.msra.mxu0 0.0
        %673 = vmatprep.subr.mxu0 0.0
        %674 = vmatpush1.msra.mxu0 0.0
        %675 = vmatprep.subr.mxu0 0.0
        %676 = vmatpush1.msra.mxu0 0.0
        %677 = vmatprep.subr.mxu0 0.0
        %678 = vmatpush1.msra.mxu0 0.0
        %679 = vmatprep.subr.mxu0 0.0
        %680 = vmatpush1.msra.mxu0 0.0
        %681 = vmatprep.subr.mxu0 0.0
        %682 = vmatpush1.msra.mxu0 0.0
        %683 = vmatprep.subr.mxu0 0.0
        %684 = vmatpush1.msra.mxu0 0.0
        %685 = vmatprep.subr.mxu0 0.0
        %686 = vmatpush1.msra.mxu0 0.0
        %687 = vmatprep.subr.mxu0 0.0
        %688 = vmatpush1.msra.mxu0 0.0
        %689 = vmatprep.subr.mxu0 0.0
        %690 = vmatpush1.msra.mxu0 0.0
        %691 = vmatprep.subr.mxu0 0.0
        %692 = vmatpush1.msra.mxu0 0.0
        %693 = vmatprep.subr.mxu0 0.0
        %694 = vmatpush1.msra.mxu0 0.0
        %695 = vmatprep.subr.mxu0 0.0
        %696 = vmatpush1.msra.mxu0 0.0
        %697 = vmatprep.subr.mxu0 0.0
        %698 = vmatpush1.msra.mxu0 0.0
        %699 = vmatprep.subr.mxu0 0.0
        %700 = vmatpush1.msra.mxu0 0.0
        %701 = vmatprep.subr.mxu0 0.0
        %702 = vmatpush1.msra.mxu0 0.0
        %703 = vmatprep.subr.mxu0 0.0
        %704 = vmatpush1.msra.mxu0 0.0
        %705 = vmatprep.subr.mxu0 0.0
        %706 = vmatpush1.msra.mxu0 0.0
        %707 = vmatprep.subr.mxu0 0.0
        %708 = vmatpush1.msra.mxu0 0.0
        %709 = vmatprep.subr.mxu0 0.0
        %710 = vmatpush1.msra.mxu0 0.0
        %711 = vmatprep.mubr.f32.mxu0 0.0
        %712 = vmatmul.mubr.f32.gmra.mrb[0].mxu0 %v645
        %v713 = vpop.f32.mrb[0].mxu0
        %v714 = vadd.f32 0.0, %v713
        %v715 = vpop.f32.mrb[0].mxu0
        %716 = vdwg.mxu0
        %vm717 = vcmask 64512
        %718 = vst.msk [vmem:[%s466] sm:$0xff] %vm717, %v562
        %719 = vst.msk [vmem:[%s473] sm:$0xff] %vm717, %v637
        %720 = vst.msk [vmem:[%s480] sm:$0xff] %vm717, %v714
        %722 = vrot.lane.b32.xlu0 %v562, 120
        %v723 = vpop.permute.xlu0 %722
        %s725 = scalar_lea.vmem %s466, 8 [#allocation13]
        %726 = vst.msk [vmem:[%s725] sm:$0xff] %vm717, %v723
        %728 = vrot.lane.b32.xlu0 %v637, 120
        %v729 = vpop.permute.xlu0 %728
        %s731 = scalar_lea.vmem %s473, 8 [#allocation14]
        %732 = vst.msk [vmem:[%s731] sm:$0xff] %vm717, %v729
        %734 = vrot.lane.b32.xlu0 %v714, 120
        %v735 = vpop.permute.xlu0 %734
        %s737 = scalar_lea.vmem %s480, 8 [#allocation16]
        %738 = vst.msk [vmem:[%s737] sm:$0xff] %vm717, %v735
        %739 = vrot.lane.b32.xlu0 %v562, 112
        %v740 = vpop.permute.xlu0 %739
        %s742 = scalar_lea.vmem %s466, 16 [#allocation13]
        %743 = vst.msk [vmem:[%s742] sm:$0xff] %vm717, %v740
        %744 = vrot.lane.b32.xlu0 %v637, 112
        %v745 = vpop.permute.xlu0 %744
        %s747 = scalar_lea.vmem %s473, 16 [#allocation14]
        %748 = vst.msk [vmem:[%s747] sm:$0xff] %vm717, %v745
        %749 = vrot.lane.b32.xlu0 %v714, 112
        %v750 = vpop.permute.xlu0 %749
        %s752 = scalar_lea.vmem %s480, 16 [#allocation16]
        %753 = vst.msk [vmem:[%s752] sm:$0xff] %vm717, %v750
        %754 = vrot.lane.b32.xlu0 %v562, 104
        %v755 = vpop.permute.xlu0 %754
        %s757 = scalar_lea.vmem %s466, 24 [#allocation13]
        %758 = vst.msk [vmem:[%s757] sm:$0xff] %vm717, %v755
        %759 = vrot.lane.b32.xlu0 %v637, 104
        %v760 = vpop.permute.xlu0 %759
        %s762 = scalar_lea.vmem %s473, 24 [#allocation14]
        %763 = vst.msk [vmem:[%s762] sm:$0xff] %vm717, %v760
        %764 = vrot.lane.b32.xlu0 %v714, 104
        %v765 = vpop.permute.xlu0 %764
        %s767 = scalar_lea.vmem %s480, 24 [#allocation16]
        %768 = vst.msk [vmem:[%s767] sm:$0xff] %vm717, %v765
        %s769 = sand.u32 %s203, 1
        %s770 = scalar_lea.sflag [#allocation4], %s769
        %s771 = sand.u32 %s203, 1
        %s772 = smul.addr %s771, 32
        %s773 = scalar_lea.vmem [#allocation13], %s772
        %s774 = sand.u32 %s34, 1
        %s775 = scalar_lea.sflag [#allocation15], %s774
        %s776 = sand.u32 %s231, 1
        %s777 = smul.addr %s776, 32
        %s778 = scalar_lea.vmem [#allocation14], %s777
        %s779 = sand.u32 %s34, 1
        %s780 = scalar_lea.sflag [#allocation15], %s779
        %s781 = sand.u32 %s259, 1
        %s782 = smul.addr %s781, 32
        %s783 = scalar_lea.vmem [#allocation16], %s782
        // Predicated region
        $region69: #{tpu_custom_call.1} parent=43 // pred_check
          %p784 = pneg %p213
        $region70: #{tpu_custom_call.1} parent=43 // pred_check_branch
          %786 = sbr.rel (%p784) target = $region72
        $region71: #{tpu_custom_call.1} parent=43 // pred_region
          %s788 = ssub.s32 512, 512
          %789 = vsyncadd %s770, %s788
          %s790 = smul.addr %s38, 4
          %s791 = sadd.s32 %s39, %s790
          %s792 = smul.addr %s791, 128
          %s793 = scalar_lea.hbm %s6, %s792
          %s794 = sshll.u32 %s773, 4
          %s795 = int_to_ptr.vmem [resolvable:$true] %s794
          %800 = dma.vmem_to_hbm [thread:$0]  %s795, 512, %s793, %s770, 128, 128, 8
        $region72: #{tpu_custom_call.1} parent=43 // pred_fallthru
          _
        // Predicated region
        $region73: #{tpu_custom_call.1} parent=43 // pred_check
          %p801 = pneg %p241
        $region74: #{tpu_custom_call.1} parent=43 // pred_check_branch
          %803 = sbr.rel (%p801) target = $region76
        $region75: #{tpu_custom_call.1} parent=43 // pred_region
          %s805 = ssub.s32 512, 512
          %806 = vsyncadd %s775, %s805
          %s807 = smul.addr %s38, 4
          %s808 = sadd.s32 %s39, %s807
          %s809 = smul.addr %s808, 128
          %s810 = scalar_lea.hbm %s7, %s809
          %s811 = sshll.u32 %s778, 4
          %s812 = int_to_ptr.vmem [resolvable:$true] %s811
          %817 = dma.vmem_to_hbm [thread:$0]  %s812, 512, %s810, %s775, 128, 128, 8
        $region76: #{tpu_custom_call.1} parent=43 // pred_fallthru
          _
        // Predicated region
        $region77: #{tpu_custom_call.1} parent=43 // pred_check
          %p818 = pneg %p269
        $region78: #{tpu_custom_call.1} parent=43 // pred_check_branch
          %820 = sbr.rel (%p818) target = $region80
        $region79: #{tpu_custom_call.1} parent=43 // pred_region
          %s822 = ssub.s32 512, 512
          %823 = vsyncadd %s780, %s822
          %s824 = smul.addr %s38, 4
          %s825 = sadd.s32 %s39, %s824
          %s826 = smul.addr %s825, 128
          %s827 = scalar_lea.hbm %s8, %s826
          %s828 = sshll.u32 %s783, 4
          %s829 = int_to_ptr.vmem [resolvable:$true] %s828
          %834 = dma.vmem_to_hbm [thread:$0]  %s829, 512, %s827, %s780, 128, 128, 8
        $region80: #{tpu_custom_call.1} parent=43 // pred_fallthru
          _
      $region44: #{tpu_custom_call.1} parent=5 // pred_fallthru
        _
      %p835 = scmp.le.s32.totalorder 2, %s29
      // Predicated region
      $region81: #{tpu_custom_call.1} parent=5 // pred_check
        %p836 = pneg %p835
      $region82: #{tpu_custom_call.1} parent=5 // pred_check_branch
        %838 = sbr.rel (%p836) target = $region84
      $region83: #{tpu_custom_call.1} parent=5 // pred_region
        %s839 = ssub.s32 %s29, 2
        // Predicated region
        $region85: #{tpu_custom_call.1} parent=83 // pred_check
          %p840 = pneg %p219
        $region86: #{tpu_custom_call.1} parent=83 // pred_check_branch
          %842 = sbr.rel (%p840) target = $region88
        $region87: #{tpu_custom_call.1} parent=83 // pred_region
          %s843 = sand.u32 %s204, 1
          %s844 = scalar_lea.sflag [#allocation4], %s843
          %s845 = sand.u32 %s204, 1
          %s846 = smul.addr %s845, 32
          %s847 = scalar_lea.vmem [#allocation13], %s846
          %848 = dma.done %s844, 512
        $region88: #{tpu_custom_call.1} parent=83 // pred_fallthru
          _
        // Predicated region
        $region89: #{tpu_custom_call.1} parent=83 // pred_check
          %p849 = pneg %p247
        $region90: #{tpu_custom_call.1} parent=83 // pred_check_branch
          %851 = sbr.rel (%p849) target = $region92
        $region91: #{tpu_custom_call.1} parent=83 // pred_region
          %s852 = sand.u32 %s35, 1
          %s853 = scalar_lea.sflag [#allocation15], %s852
          %s854 = sand.u32 %s232, 1
          %s855 = smul.addr %s854, 32
          %s856 = scalar_lea.vmem [#allocation14], %s855
          %857 = dma.done %s853, 512
        $region92: #{tpu_custom_call.1} parent=83 // pred_fallthru
          _
        // Predicated region
        $region93: #{tpu_custom_call.1} parent=83 // pred_check
          %p858 = pneg %p275
        $region94: #{tpu_custom_call.1} parent=83 // pred_check_branch
          %860 = sbr.rel (%p858) target = $region96
        $region95: #{tpu_custom_call.1} parent=83 // pred_region
          %s861 = sand.u32 %s35, 1
          %s862 = scalar_lea.sflag [#allocation15], %s861
          %s863 = sand.u32 %s260, 1
          %s864 = smul.addr %s863, 32
          %s865 = scalar_lea.vmem [#allocation16], %s864
          %866 = dma.done %s862, 512
        $region96: #{tpu_custom_call.1} parent=83 // pred_fallthru
          _
      $region84: #{tpu_custom_call.1} parent=5 // pred_fallthru
        _
    $region6: #{tpu_custom_call.1} parent=1 // loop_footer
      %s33 = sadd.s32 1, %s29
    $region7: #{tpu_custom_call.1} parent=1 // loop_footer_branch
      %28 = sbr.rel target = $region3
    $region8: #{tpu_custom_call.1} parent=1 // loop_exit
      _
    %867 = vsyncpa [#allocation3], 1
    %s868 = scalar_lea.sflag [#allocation3], 1
    %869 = vsyncpa %s868, 1
    %870 = vsyncpa [#allocation6], 1
    %s871 = scalar_lea.sflag [#allocation6], 1
    %872 = vsyncpa %s871, 1
    %873 = vsyncpa [#allocation9], 1
    %874 = vsyncpa [#allocation12], 1
    %875 = vsyncpa [#allocation4], 1
    %s876 = scalar_lea.sflag [#allocation4], 1
    %877 = vsyncpa %s876, 1
    %878 = vsyncpa [#allocation15], 1
    %s879 = scalar_lea.sflag [#allocation15], 1
    %880 = vsyncpa %s879, 1

</llo_original>
